<compile_context>
chip_gen: v6e
topology: v6e:2x2x1
jax: 0.10.0
libtpu: 0.0.40
codegen_flags: <defaults>
</compile_context>

<pallas_src>
import functools
import math

import jax
import jax.numpy as jnp
from jax import lax
from jax.experimental import pallas as pl
from jax.experimental.pallas import tpu as pltpu

BN_EPS = 1e-5        # nn.BatchNorm1d default
NORM_EPS = 1e-12     # F.normalize default


def _pick_tile(n, cap):
    # Largest multiple of 128 that divides n, is <= cap, and leaves >= 2 grid
    # steps (so DMA/compute actually overlap); fall back to one whole block.
    best = None
    t = 128
    while t <= min(n, cap):
        if n % t == 0 and n // t >= 2:
            best = t
        t += 128
    return best if best is not None else n


# ----------------------------------------------------------------------------
# Kernel 1: embedding path  (HotelIdBackbone.forward)
#   backbone stub (GAP + linear)  ->  weight_norm Linear -> BatchNorm1d ->
#   Dropout(eval=identity)        ->  weight_norm Linear -> BatchNorm1d
# ----------------------------------------------------------------------------
def _embed_kernel(x_ref, wbt_ref, bb_ref,
                  w1t_ref, b1_ref, gamma1_ref, beta1_ref,
                  w2t_ref, b2_ref, gamma2_ref, beta2_ref,
                  out_ref, acc_ref, *, inv_hw):
    # TODO(synk): the timm efficientnet_b3 backbone has no clean Pallas
    # equivalent; it is replaced by a deterministic GAP + linear feature stub.
    s_idx = pl.program_id(0)

    @pl.when(s_idx == 0)
    def _init():
        acc_ref[...] = jnp.zeros_like(acc_ref)

    # Global-average-pool partial sum for this spatial chunk
    # (bf16 HBM traffic, f32 accumulation).
    acc_ref[...] += jnp.sum(x_ref[...].astype(jnp.float32), axis=2)

    @pl.when(s_idx == pl.num_programs(0) - 1)
    def _finalize():
        pooled = acc_ref[...] * inv_hw                               # (B, C) f32

        # backbone stub: Linear(C -> IF)
        feat = jnp.dot(pooled.astype(jnp.bfloat16), wbt_ref[...],
                       preferred_element_type=jnp.float32) + bb_ref[...]

        # post[0]: weight_norm(Linear(IF, 2E), dim=None); scale pre-folded.
        y1 = jnp.dot(feat.astype(jnp.bfloat16), w1t_ref[...],
                     preferred_element_type=jnp.float32) + b1_ref[...]

        # post[1]: BatchNorm1d(2E) (training-mode batch statistics, biased var)
        mu1 = jnp.mean(y1, axis=0, keepdims=True)
        var1 = jnp.mean((y1 - mu1) ** 2, axis=0, keepdims=True)
        h1 = (y1 - mu1) * lax.rsqrt(var1 + BN_EPS) * gamma1_ref[...] + beta1_ref[...]

        # post[2]: Dropout(0.2) -> identity (inference semantics)

        # post[3]: weight_norm(Linear(2E, E), dim=None); scale pre-folded.
        y2 = jnp.dot(h1.astype(jnp.bfloat16), w2t_ref[...],
                     preferred_element_type=jnp.float32) + b2_ref[...]

        # post[4]: BatchNorm1d(E)
        mu2 = jnp.mean(y2, axis=0, keepdims=True)
        var2 = jnp.mean((y2 - mu2) ** 2, axis=0, keepdims=True)
        out_ref[...] = ((y2 - mu2) * lax.rsqrt(var2 + BN_EPS)
                        * gamma2_ref[...] + beta2_ref[...])


# ----------------------------------------------------------------------------
# Kernel 2: ArcMarginProduct.forward, tiled over num_hotels
# ----------------------------------------------------------------------------
def _arc_margin_kernel(emb_ref, wnt_ref, label_ref, out_ref, *,
                       s, cos_m, sin_m, th, mm, tn):
    j = pl.program_id(0)
    emb = emb_ref[...]                                               # (B, E) f32
    emb_n = emb / jnp.maximum(
        jnp.sqrt(jnp.sum(emb * emb, axis=1, keepdims=True)), NORM_EPS)

    # cosine = normalize(input) @ normalize(weight).T ; weight pre-normalized
    # and pre-transposed in the wrapper -> plain lane-dense matmul.
    cosine = jnp.dot(emb_n.astype(jnp.bfloat16), wnt_ref[...],
                     preferred_element_type=jnp.float32)             # (B, TN)

    sine = jnp.sqrt(jnp.clip(1.0 - cosine * cosine, 0.0, 1.0))
    phi = cosine * cos_m - sine * sin_m
    phi = jnp.where(cosine > th, phi, cosine - mm)                   # easy_margin=False

    cols = lax.broadcasted_iota(jnp.int32, cosine.shape, 1) + j * tn
    one_hot = (cols == label_ref[...]).astype(jnp.float32)           # label: (B, 1)

    out_ref[...] = (one_hot * phi + (1.0 - one_hot) * cosine) * s


# ----------------------------------------------------------------------------
# Wrapper: parameter construction (deterministic) + pallas_call glue
# ----------------------------------------------------------------------------
class HotelIDPallas:
    def __init__(self, num_embedding, num_hotels, in_channels,
                 backbone_features=64, key=None):
        self.num_embedding = num_embedding
        self.num_hotels = num_hotels
        self.backbone_features = backbone_features
        if key is None:
            key = jax.random.PRNGKey(0)
        ks = jax.random.split(key, 8)

        E, IF, C, NH = num_embedding, backbone_features, in_channels, num_hotels
        H1 = 2 * E

        # backbone stub: Linear(C -> IF)
        lim_b = math.sqrt(6.0 / (C + IF))
        wb = jax.random.uniform(ks[0], (IF, C), jnp.float32, -lim_b, lim_b)
        self.wbt = wb.T.astype(jnp.bfloat16)                    # (C, IF)
        self.bb = jnp.zeros((1, IF), jnp.float32)

        # post[0]: weight_norm(Linear(IF -> 2E), dim=None): w = g * v/||v||_F.
        # g and v are static per call -> fold the scalar scale into the weight.
        lim1 = math.sqrt(6.0 / (IF + H1))
        v1 = jax.random.uniform(ks[1], (H1, IF), jnp.float32, -lim1, lim1)
        g1 = jnp.sqrt(jnp.sum(v1 * v1))                         # PyTorch init: g = ||v||
        w1 = (g1 / jnp.sqrt(jnp.sum(v1 * v1))) * v1
        self.w1t = w1.T.astype(jnp.bfloat16)                    # (IF, 2E)
        self.b1 = jax.random.uniform(ks[2], (1, H1), jnp.float32, -0.01, 0.01)
        self.gamma1 = jnp.ones((1, H1), jnp.float32)
        self.beta1 = jnp.zeros((1, H1), jnp.float32)

        # post[3]: weight_norm(Linear(2E -> E), dim=None)
        lim2 = math.sqrt(6.0 / (H1 + E))
        v2 = jax.random.uniform(ks[3], (E, H1), jnp.float32, -lim2, lim2)
        g2 = jnp.sqrt(jnp.sum(v2 * v2))
        w2 = (g2 / jnp.sqrt(jnp.sum(v2 * v2))) * v2
        self.w2t = w2.T.astype(jnp.bfloat16)                    # (2E, E)
        self.b2 = jax.random.uniform(ks[4], (1, E), jnp.float32, -0.01, 0.01)
        self.gamma2 = jnp.ones((1, E), jnp.float32)
        self.beta2 = jnp.zeros((1, E), jnp.float32)

        # ArcMarginProduct(E -> NH), xavier_uniform, s=30.0, m=0.2.
        # F.normalize(weight) is static per call -> pre-normalize + pre-transpose.
        lim_a = math.sqrt(6.0 / (E + NH))
        arc_w = jax.random.uniform(ks[5], (NH, E), jnp.float32, -lim_a, lim_a)
        arc_norm = jnp.sqrt(jnp.sum(arc_w * arc_w, axis=1, keepdims=True))
        self.arc_wnt = (arc_w / jnp.maximum(arc_norm, NORM_EPS)).T.astype(jnp.bfloat16)

        self.s = 30.0
        m = 0.2
        self.cos_m = math.cos(m)
        self.sin_m = math.sin(m)
        self.th = math.cos(math.pi - m)
        self.mm = math.sin(math.pi - m) * m

    # HotelID.embed
    def embed(self, x_nchw):
        B, C, H, W = x_nchw.shape
        S = H * W
        E, IF, H1 = self.num_embedding, self.backbone_features, 2 * self.num_embedding
        x3 = x_nchw.reshape(B, C, S).astype(jnp.bfloat16)       # glue reshape + bf16

        # Spatial tile: multiple of 128 dividing S, double-buffered bytes <= ~8 MiB
        # (safe for v7x 64 MiB VMEM and v5e 16 MiB scoped default).
        ts_cap = max(128, (4 * 1024 * 1024) // max(1, B * C * 2) // 128 * 128)
        ts = _pick_tile(S, ts_cap)
        grid = (S // ts,)

        args = (x3, self.wbt, self.bb,
                self.w1t, self.b1, self.gamma1, self.beta1,
                self.w2t, self.b2, self.gamma2, self.beta2)
        in_specs = [pl.BlockSpec((B, C, ts), lambda s_: (0, 0, s_))]
        in_specs += [pl.BlockSpec(p.shape, lambda s_: (0, 0)) for p in args[1:]]

        flops = int(2 * B * (C * S + C * IF + IF * H1 + H1 * E) + 12 * B * (H1 + E))
        bytes_accessed = int(x3.size * 2
                             + (C * IF + IF * H1 + H1 * E) * 2
                             + (IF + 3 * H1 + 3 * E) * 4
                             + B * E * 4)

        kernel = functools.partial(_embed_kernel, inv_hw=1.0 / float(S))
        return pl.pallas_call(
            kernel,
            out_shape=jax.ShapeDtypeStruct((B, E), jnp.float32),
            grid=grid,
            in_specs=in_specs,
            out_specs=pl.BlockSpec((B, E), lambda s_: (0, 0)),
            scratch_shapes=[pltpu.VMEM((B, C), jnp.float32)],
            compiler_params=pltpu.CompilerParams(
                dimension_semantics=("arbitrary",),        # spatial reduction axis
                vmem_limit_bytes=48 * 1024 * 1024),
            cost_estimate=pl.CostEstimate(flops=flops, transcendentals=0,
                                          bytes_accessed=bytes_accessed),
        )(*args)

    # HotelID.forward
    def __call__(self, x_nchw, labels=None):
        emb = self.embed(x_nchw)
        if labels is None:
            return emb
        B = emb.shape[0]
        E, NH = self.num_embedding, self.num_hotels
        labels2d = labels.reshape(B, 1).astype(jnp.int32)

        tn = _pick_tile(NH, 512)                            # lane-dense output tiles
        grid = (NH // tn,)

        kernel = functools.partial(_arc_margin_kernel, s=self.s,
                                   cos_m=self.cos_m, sin_m=self.sin_m,
                                   th=self.th, mm=self.mm, tn=tn)

        flops = int(2 * B * E * NH + 12 * B * NH)
        bytes_accessed = int(B * E * 4 + E * NH * 2 + B * 4 + B * NH * 4)

        preds = pl.pallas_call(
            kernel,
            out_shape=jax.ShapeDtypeStruct((B, NH), jnp.float32),
            grid=grid,
            in_specs=[pl.BlockSpec((B, E), lambda j: (0, 0)),
                      pl.BlockSpec((E, tn), lambda j: (0, j)),
                      pl.BlockSpec((B, 1), lambda j: (0, 0))],
            out_specs=pl.BlockSpec((B, tn), lambda j: (0, j)),
            compiler_params=pltpu.CompilerParams(
                dimension_semantics=("parallel",),          # hotel tiles independent
                vmem_limit_bytes=48 * 1024 * 1024),
            cost_estimate=pl.CostEstimate(flops=flops, transcendentals=int(B * NH),
                                          bytes_accessed=bytes_accessed),
        )(emb, self.arc_wnt, labels2d)
        return emb, preds


if __name__ == "__main__":
    B, C, H, W = 2, 4, 16, 16
    NUM_EMBEDDING = 32
    NUM_HOTELS = 256          # -> 2 hotel tiles of 128 (exercises the NH grid)

    key = jax.random.PRNGKey(0)
    kx, kl, kp = jax.random.split(key, 3)
    x = jax.random.normal(kx, (B, C, H, W), dtype=jnp.float32)
    labels = jax.random.randint(kl, (B,), 0, NUM_HOTELS, dtype=jnp.int32)

    model = HotelIDPallas(num_embedding=NUM_EMBEDDING, num_hotels=NUM_HOTELS,
                          in_channels=C, backbone_features=64, key=kp)

    embeddings, preds = model(x, labels)
    jax.block_until_ready((embeddings, preds))

    assert embeddings.shape == (B, NUM_EMBEDDING)
    assert preds.shape == (B, NUM_HOTELS)
    assert embeddings.dtype == jnp.float32 and preds.dtype == jnp.float32

    print("KERNEL_OK")
</pallas_src>

<mosaic_0001>
module attributes {stable_mosaic.version = 11 : i64} {
  func.func @_embed_kernel(%arg0: i32, %arg1: memref<2x4x128xbf16, #tpu.memory_space<vmem>>, %arg2: memref<4x64xbf16, #tpu.memory_space<vmem>>, %arg3: memref<1x64xf32, #tpu.memory_space<vmem>>, %arg4: memref<64x64xbf16, #tpu.memory_space<vmem>>, %arg5: memref<1x64xf32, #tpu.memory_space<vmem>>, %arg6: memref<1x64xf32, #tpu.memory_space<vmem>>, %arg7: memref<1x64xf32, #tpu.memory_space<vmem>>, %arg8: memref<64x32xbf16, #tpu.memory_space<vmem>>, %arg9: memref<1x32xf32, #tpu.memory_space<vmem>>, %arg10: memref<1x32xf32, #tpu.memory_space<vmem>>, %arg11: memref<1x32xf32, #tpu.memory_space<vmem>>, %arg12: memref<2x32xf32, #tpu.memory_space<vmem>>, %arg13: memref<2x4xf32, #tpu.memory_space<vmem>>) attributes {dimension_semantics = [#tpu.dimension_semantics<arbitrary>], iteration_bounds = array<i64: 2>, scalar_prefetch = 0 : i64, scratch_operands = 1 : i64, tpu.core_type = #tpu.core_type<tc>, window_params = [{transform_indices = @transform_0, window_bounds = array<i64: 2, 4, 128>}, {pipeline_mode = #tpu.pipeline_mode<synchronous>, transform_indices = @transform_1, window_bounds = array<i64: 4, 64>}, {pipeline_mode = #tpu.pipeline_mode<synchronous>, transform_indices = @transform_2, window_bounds = array<i64: 1, 64>}, {pipeline_mode = #tpu.pipeline_mode<synchronous>, transform_indices = @transform_3, window_bounds = array<i64: 64, 64>}, {pipeline_mode = #tpu.pipeline_mode<synchronous>, transform_indices = @transform_4, window_bounds = array<i64: 1, 64>}, {pipeline_mode = #tpu.pipeline_mode<synchronous>, transform_indices = @transform_5, window_bounds = array<i64: 1, 64>}, {pipeline_mode = #tpu.pipeline_mode<synchronous>, transform_indices = @transform_6, window_bounds = array<i64: 1, 64>}, {pipeline_mode = #tpu.pipeline_mode<synchronous>, transform_indices = @transform_7, window_bounds = array<i64: 64, 32>}, {pipeline_mode = #tpu.pipeline_mode<synchronous>, transform_indices = @transform_8, window_bounds = array<i64: 1, 32>}, {pipeline_mode = #tpu.pipeline_mode<synchronous>, transform_indices = @transform_9, window_bounds = array<i64: 1, 32>}, {pipeline_mode = #tpu.pipeline_mode<synchronous>, transform_indices = @transform_10, window_bounds = array<i64: 1, 32>}, {pipeline_mode = #tpu.pipeline_mode<synchronous>, transform_indices = @transform_11, window_bounds = array<i64: 2, 32>}]} {
    %c0_i32 = arith.constant 0 : i32
    %0 = arith.cmpi eq, %arg0, %c0_i32 : i32
    %1 = arith.extui %0 : i1 to i32
    %c0_i32_0 = arith.constant 0 : i32
    %2 = arith.cmpi ne, %1, %c0_i32_0 : i32
    scf.if %2 {
      %cst_8 = arith.constant 0.000000e+00 : f32
      %12 = vector.broadcast %cst_8 : f32 to vector<2x4xf32>
      %c0_9 = arith.constant 0 : index
      %c0_10 = arith.constant 0 : index
      %13 = vector.load %arg13[%c0_9, %c0_10] : memref<2x4xf32, #tpu.memory_space<vmem>>, vector<2x4xf32>
      tpu.vector_store %arg13[%c0_9, %c0_10], %12 {strides = array<i32>} : memref<2x4xf32, #tpu.memory_space<vmem>>, vector<2x4xf32>,
    } else {
    }
    %c0 = arith.constant 0 : index
    %c0_1 = arith.constant 0 : index
    %3 = vector.load %arg13[%c0, %c0_1] : memref<2x4xf32, #tpu.memory_space<vmem>>, vector<2x4xf32>
    %c0_2 = arith.constant 0 : index
    %c0_3 = arith.constant 0 : index
    %c0_4 = arith.constant 0 : index
    %4 = vector.load %arg1[%c0_2, %c0_3, %c0_4] : memref<2x4x128xbf16, #tpu.memory_space<vmem>>, vector<2x4x128xbf16>
    %5 = arith.extf %4 : vector<2x4x128xbf16> to vector<2x4x128xf32>
    %cst = arith.constant dense<0.000000e+00> : vector<2x4xf32>
    %6 = vector.multi_reduction <add>, %5, %cst [2] : vector<2x4x128xf32> to vector<2x4xf32>
    %7 = arith.addf %3, %6 : vector<2x4xf32>
    %c0_5 = arith.constant 0 : index
    %c0_6 = arith.constant 0 : index
    %8 = vector.load %arg13[%c0_5, %c0_6] : memref<2x4xf32, #tpu.memory_space<vmem>>, vector<2x4xf32>
    tpu.vector_store %arg13[%c0_5, %c0_6], %7 {strides = array<i32>} : memref<2x4xf32, #tpu.memory_space<vmem>>, vector<2x4xf32>,
    %c1_i32 = arith.constant 1 : i32
    %9 = arith.cmpi eq, %arg0, %c1_i32 : i32
    %10 = arith.extui %9 : i1 to i32
    %c0_i32_7 = arith.constant 0 : i32
    %11 = arith.cmpi ne, %10, %c0_i32_7 : i32
    scf.if %11 {
      %c0_8 = arith.constant 0 : index
      %c0_9 = arith.constant 0 : index
      %12 = vector.load %arg13[%c0_8, %c0_9] : memref<2x4xf32, #tpu.memory_space<vmem>>, vector<2x4xf32>
      %cst_10 = arith.constant 3.906250e-03 : f32
      %13 = vector.broadcast %cst_10 : f32 to vector<2x4xf32>
      %14 = arith.mulf %12, %13 : vector<2x4xf32>
      %15 = arith.truncf %14 : vector<2x4xf32> to vector<2x4xbf16>
      %c0_11 = arith.constant 0 : index
      %c0_12 = arith.constant 0 : index
      %16 = vector.load %arg2[%c0_11, %c0_12] : memref<4x64xbf16, #tpu.memory_space<vmem>>, vector<4x64xbf16>
      %cst_13 = arith.constant dense<0.000000e+00> : vector<2x64xf32>
      %17 = tpu.matmul %15, %16, %cst_13 {dimension_numbers = #tpu.dot_dimension_numbers<[1], [0], [0], [1], [0, 0, 1, 1], [], []>} : vector<2x4xbf16>, vector<4x64xbf16>, vector<2x64xf32> -> vector<2x64xf32>
      %c0_14 = arith.constant 0 : index
      %c0_15 = arith.constant 0 : index
      %18 = vector.load %arg3[%c0_14, %c0_15] : memref<1x64xf32, #tpu.memory_space<vmem>>, vector<1x64xf32>
      %19 = vector.broadcast %18 : vector<1x64xf32> to vector<2x64xf32>
      %20 = arith.addf %17, %19 : vector<2x64xf32>
      %21 = arith.truncf %20 : vector<2x64xf32> to vector<2x64xbf16>
      %c0_16 = arith.constant 0 : index
      %c0_17 = arith.constant 0 : index
      %22 = vector.load %arg4[%c0_16, %c0_17] : memref<64x64xbf16, #tpu.memory_space<vmem>>, vector<64x64xbf16>
      %cst_18 = arith.constant dense<0.000000e+00> : vector<2x64xf32>
      %23 = tpu.matmul %21, %22, %cst_18 {dimension_numbers = #tpu.dot_dimension_numbers<[1], [0], [0], [1], [0, 0, 1, 1], [], []>} : vector<2x64xbf16>, vector<64x64xbf16>, vector<2x64xf32> -> vector<2x64xf32>
      %c0_19 = arith.constant 0 : index
      %c0_20 = arith.constant 0 : index
      %24 = vector.load %arg5[%c0_19, %c0_20] : memref<1x64xf32, #tpu.memory_space<vmem>>, vector<1x64xf32>
      %25 = vector.broadcast %24 : vector<1x64xf32> to vector<2x64xf32>
      %26 = arith.addf %23, %25 : vector<2x64xf32>
      %cst_21 = arith.constant dense<0.000000e+00> : vector<64xf32>
      %27 = vector.multi_reduction <add>, %26, %cst_21 [0] : vector<2x64xf32> to vector<64xf32>
      %28 = vector.shape_cast %27 : vector<64xf32> to vector<1x64xf32>
      %cst_22 = arith.constant 2.000000e+00 : f32
      %29 = vector.broadcast %cst_22 : f32 to vector<1x64xf32>
      %30 = arith.divf %28, %29 : vector<1x64xf32>
      %31 = vector.broadcast %30 : vector<1x64xf32> to vector<2x64xf32>
      %32 = arith.subf %26, %31 : vector<2x64xf32>
      %33 = arith.mulf %32, %32 : vector<2x64xf32>
      %cst_23 = arith.constant dense<0.000000e+00> : vector<64xf32>
      %34 = vector.multi_reduction <add>, %33, %cst_23 [0] : vector<2x64xf32> to vector<64xf32>
      %35 = vector.shape_cast %34 : vector<64xf32> to vector<1x64xf32>
      %cst_24 = arith.constant 2.000000e+00 : f32
      %36 = vector.broadcast %cst_24 : f32 to vector<1x64xf32>
      %37 = arith.divf %35, %36 : vector<1x64xf32>
      %38 = vector.broadcast %30 : vector<1x64xf32> to vector<2x64xf32>
      %39 = arith.subf %26, %38 : vector<2x64xf32>
      %cst_25 = arith.constant 9.99999974E-6 : f32
      %40 = vector.broadcast %cst_25 : f32 to vector<1x64xf32>
      %41 = arith.addf %37, %40 : vector<1x64xf32>
      %42 = math.rsqrt %41 : vector<1x64xf32>
      %43 = vector.broadcast %42 : vector<1x64xf32> to vector<2x64xf32>
      %44 = arith.mulf %39, %43 : vector<2x64xf32>
      %c0_26 = arith.constant 0 : index
      %c0_27 = arith.constant 0 : index
      %45 = vector.load %arg6[%c0_26, %c0_27] : memref<1x64xf32, #tpu.memory_space<vmem>>, vector<1x64xf32>
      %46 = vector.broadcast %45 : vector<1x64xf32> to vector<2x64xf32>
      %47 = arith.mulf %44, %46 : vector<2x64xf32>
      %c0_28 = arith.constant 0 : index
      %c0_29 = arith.constant 0 : index
      %48 = vector.load %arg7[%c0_28, %c0_29] : memref<1x64xf32, #tpu.memory_space<vmem>>, vector<1x64xf32>
      %49 = vector.broadcast %48 : vector<1x64xf32> to vector<2x64xf32>
      %50 = arith.addf %47, %49 : vector<2x64xf32>
      %51 = arith.truncf %50 : vector<2x64xf32> to vector<2x64xbf16>
      %c0_30 = arith.constant 0 : index
      %c0_31 = arith.constant 0 : index
      %52 = vector.load %arg8[%c0_30, %c0_31] : memref<64x32xbf16, #tpu.memory_space<vmem>>, vector<64x32xbf16>
      %cst_32 = arith.constant dense<0.000000e+00> : vector<2x32xf32>
      %53 = tpu.matmul %51, %52, %cst_32 {dimension_numbers = #tpu.dot_dimension_numbers<[1], [0], [0], [1], [0, 0, 1, 1], [], []>} : vector<2x64xbf16>, vector<64x32xbf16>, vector<2x32xf32> -> vector<2x32xf32>
      %c0_33 = arith.constant 0 : index
      %c0_34 = arith.constant 0 : index
      %54 = vector.load %arg9[%c0_33, %c0_34] : memref<1x32xf32, #tpu.memory_space<vmem>>, vector<1x32xf32>
      %55 = vector.broadcast %54 : vector<1x32xf32> to vector<2x32xf32>
      %56 = arith.addf %53, %55 : vector<2x32xf32>
      %cst_35 = arith.constant dense<0.000000e+00> : vector<32xf32>
      %57 = vector.multi_reduction <add>, %56, %cst_35 [0] : vector<2x32xf32> to vector<32xf32>
      %58 = vector.shape_cast %57 : vector<32xf32> to vector<1x32xf32>
      %cst_36 = arith.constant 2.000000e+00 : f32
      %59 = vector.broadcast %cst_36 : f32 to vector<1x32xf32>
      %60 = arith.divf %58, %59 : vector<1x32xf32>
      %61 = vector.broadcast %60 : vector<1x32xf32> to vector<2x32xf32>
      %62 = arith.subf %56, %61 : vector<2x32xf32>
      %63 = arith.mulf %62, %62 : vector<2x32xf32>
      %cst_37 = arith.constant dense<0.000000e+00> : vector<32xf32>
      %64 = vector.multi_reduction <add>, %63, %cst_37 [0] : vector<2x32xf32> to vector<32xf32>
      %65 = vector.shape_cast %64 : vector<32xf32> to vector<1x32xf32>
      %cst_38 = arith.constant 2.000000e+00 : f32
      %66 = vector.broadcast %cst_38 : f32 to vector<1x32xf32>
      %67 = arith.divf %65, %66 : vector<1x32xf32>
      %68 = vector.broadcast %60 : vector<1x32xf32> to vector<2x32xf32>
      %69 = arith.subf %56, %68 : vector<2x32xf32>
      %cst_39 = arith.constant 9.99999974E-6 : f32
      %70 = vector.broadcast %cst_39 : f32 to vector<1x32xf32>
      %71 = arith.addf %67, %70 : vector<1x32xf32>
      %72 = math.rsqrt %71 : vector<1x32xf32>
      %73 = vector.broadcast %72 : vector<1x32xf32> to vector<2x32xf32>
      %74 = arith.mulf %69, %73 : vector<2x32xf32>
      %c0_40 = arith.constant 0 : index
      %c0_41 = arith.constant 0 : index
      %75 = vector.load %arg10[%c0_40, %c0_41] : memref<1x32xf32, #tpu.memory_space<vmem>>, vector<1x32xf32>
      %76 = vector.broadcast %75 : vector<1x32xf32> to vector<2x32xf32>
      %77 = arith.mulf %74, %76 : vector<2x32xf32>
      %c0_42 = arith.constant 0 : index
      %c0_43 = arith.constant 0 : index
      %78 = vector.load %arg11[%c0_42, %c0_43] : memref<1x32xf32, #tpu.memory_space<vmem>>, vector<1x32xf32>
      %79 = vector.broadcast %78 : vector<1x32xf32> to vector<2x32xf32>
      %80 = arith.addf %77, %79 : vector<2x32xf32>
      %c0_44 = arith.constant 0 : index
      %c0_45 = arith.constant 0 : index
      %81 = vector.load %arg12[%c0_44, %c0_45] : memref<2x32xf32, #tpu.memory_space<vmem>>, vector<2x32xf32>
      tpu.vector_store %arg12[%c0_44, %c0_45], %80 {strides = array<i32>} : memref<2x32xf32, #tpu.memory_space<vmem>>, vector<2x32xf32>,
    } else {
    }
    return
  }
  func.func @transform_0(%arg0: i32) -> (i32, i32, i32) {
    %c0_i32 = arith.constant 0 : i32
    %c0_i32_0 = arith.constant 0 : i32
    %c0_i32_1 = arith.constant 0 : i32
    return %c0_i32, %c0_i32_0, %arg0 : i32, i32, i32
  }
  func.func @transform_1(%arg0: i32) -> (i32, i32) {
    %c0_i32 = arith.constant 0 : i32
    %c0_i32_0 = arith.constant 0 : i32
    %c0_i32_1 = arith.constant 0 : i32
    return %c0_i32, %c0_i32_0 : i32, i32
  }
  func.func @transform_2(%arg0: i32) -> (i32, i32) {
    %c0_i32 = arith.constant 0 : i32
    %c0_i32_0 = arith.constant 0 : i32
    %c0_i32_1 = arith.constant 0 : i32
    return %c0_i32, %c0_i32_0 : i32, i32
  }
  func.func @transform_3(%arg0: i32) -> (i32, i32) {
    %c0_i32 = arith.constant 0 : i32
    %c0_i32_0 = arith.constant 0 : i32
    %c0_i32_1 = arith.constant 0 : i32
    return %c0_i32, %c0_i32_0 : i32, i32
  }
  func.func @transform_4(%arg0: i32) -> (i32, i32) {
    %c0_i32 = arith.constant 0 : i32
    %c0_i32_0 = arith.constant 0 : i32
    %c0_i32_1 = arith.constant 0 : i32
    return %c0_i32, %c0_i32_0 : i32, i32
  }
  func.func @transform_5(%arg0: i32) -> (i32, i32) {
    %c0_i32 = arith.constant 0 : i32
    %c0_i32_0 = arith.constant 0 : i32
    %c0_i32_1 = arith.constant 0 : i32
    return %c0_i32, %c0_i32_0 : i32, i32
  }
  func.func @transform_6(%arg0: i32) -> (i32, i32) {
    %c0_i32 = arith.constant 0 : i32
    %c0_i32_0 = arith.constant 0 : i32
    %c0_i32_1 = arith.constant 0 : i32
    return %c0_i32, %c0_i32_0 : i32, i32
  }
  func.func @transform_7(%arg0: i32) -> (i32, i32) {
    %c0_i32 = arith.constant 0 : i32
    %c0_i32_0 = arith.constant 0 : i32
    %c0_i32_1 = arith.constant 0 : i32
    return %c0_i32, %c0_i32_0 : i32, i32
  }
  func.func @transform_8(%arg0: i32) -> (i32, i32) {
    %c0_i32 = arith.constant 0 : i32
    %c0_i32_0 = arith.constant 0 : i32
    %c0_i32_1 = arith.constant 0 : i32
    return %c0_i32, %c0_i32_0 : i32, i32
  }
  func.func @transform_9(%arg0: i32) -> (i32, i32) {
    %c0_i32 = arith.constant 0 : i32
    %c0_i32_0 = arith.constant 0 : i32
    %c0_i32_1 = arith.constant 0 : i32
    return %c0_i32, %c0_i32_0 : i32, i32
  }
  func.func @transform_10(%arg0: i32) -> (i32, i32) {
    %c0_i32 = arith.constant 0 : i32
    %c0_i32_0 = arith.constant 0 : i32
    %c0_i32_1 = arith.constant 0 : i32
    return %c0_i32, %c0_i32_0 : i32, i32
  }
  func.func @transform_11(%arg0: i32) -> (i32, i32) {
    %c0_i32 = arith.constant 0 : i32
    %c0_i32_0 = arith.constant 0 : i32
    %c0_i32_1 = arith.constant 0 : i32
    return %c0_i32, %c0_i32_0 : i32, i32
  }
}

</mosaic_0001>

<llo_original>
// kernel: tpu_custom_call.1
$region0: #{tpu_custom_call.1}
  #allocation0 [shape = 'u32[]', space=smem, size = 0x4, offset = 0x4, fixed_abs, tag = 'smem constant byte address 0x4 - core index']
  #allocation1 [shape = 'u32[144,128]{1,0:T(1,128)}', space=vmem, size = 0x12000, scoped, tag = 'internal scratch']
  #allocation2 [shape = 'f32[2,4]{1,0:T(2,128)}', space=vmem, size = 0x400, scoped, tag = 'scratch operand']
  %s0 = inlined_call_operand.vmem [shape: bf16[2,4,256], index: 0, kind: input, shape index: {}]
  %s1 = inlined_call_operand.vmem [shape: bf16[4,64], index: 1, kind: input, shape index: {}]
  %s2 = inlined_call_operand.vmem [shape: f32[1,64], index: 2, kind: input, shape index: {}]
  %s3 = inlined_call_operand.vmem [shape: bf16[64,64], index: 3, kind: input, shape index: {}]
  %s4 = inlined_call_operand.vmem [shape: f32[1,64], index: 4, kind: input, shape index: {}]
  %s5 = inlined_call_operand.vmem [shape: f32[1,64], index: 5, kind: input, shape index: {}]
  %s6 = inlined_call_operand.vmem [shape: f32[1,64], index: 6, kind: input, shape index: {}]
  %s7 = inlined_call_operand.vmem [shape: bf16[64,32], index: 7, kind: input, shape index: {}]
  %s8 = inlined_call_operand.vmem [shape: f32[1,32], index: 8, kind: input, shape index: {}]
  %s9 = inlined_call_operand.vmem [shape: f32[1,32], index: 9, kind: input, shape index: {}]
  %s10 = inlined_call_operand.vmem [shape: f32[1,32], index: 10, kind: input, shape index: {}]
  %s11 = inlined_call_operand.hbm [shape: f32[2,32], index: 11, kind: output, shape index: {}]
  %s12 = sld [smem:[#allocation0]]
  $region119: #{tpu_custom_call.1} parent=0
    _
  %s14 = ssub.s32 1, %s12
  %s15 = scalar_select 0, %s14, %s12
  $region1: #{tpu_custom_call.1} parent=0
    #allocation3 [shape = 'u8[4096]{0}', space=vmem, size = 0x1000, scoped, tag = 'input window, operand 0']
    #allocation4 [shape = 'u8[1024]{0}', space=vmem, size = 0x400, scoped, tag = 'output window, operand 0, single buffered']
    #allocation5 [shape = 's32[2]{0}', space=sflag, size = 0x8, scoped, tag = 'scoped memory for tpu_custom_call.1']
    %16 = vsyncpa [#allocation5], 0
    loop: start=0, step=1, limit=4
    $region2: #{tpu_custom_call.1} parent=1 // loop_pre_header
      _
    $region3: #{tpu_custom_call.1} parent=1 // loop_header
      %s18 = sphi 0, %s22
      %p19 = scmp.ge.s32.totalorder %s18, 4
      %s28 = sphi 0, %s30
      %s31 = sphi 0, %s28
      %s32 = sphi 0, %s31
      %s48 = sphi 0, %s32
      %s52 = sphi 0, %s52
      %s54 = sphi 0, %s52
      %s55 = sphi 0, %s54
      %s69 = sphi 0, %s55
      %s73 = sphi 0, %s73
      %s75 = sphi 0, %s73
      %s76 = sphi 0, %s75
      %s90 = sphi 0, %s76
      %s94 = sphi 0, %s94
      %s96 = sphi 0, %s94
      %s97 = sphi 0, %s96
      %s111 = sphi 0, %s97
      %s115 = sphi 0, %s115
      %s117 = sphi 0, %s115
      %s118 = sphi 0, %s117
      %s132 = sphi 0, %s118
      %s136 = sphi 0, %s136
      %s138 = sphi 0, %s136
      %s139 = sphi 0, %s138
      %s153 = sphi 0, %s139
      %s157 = sphi 0, %s157
      %s159 = sphi 0, %s157
      %s160 = sphi 0, %s159
      %s174 = sphi 0, %s160
      %s178 = sphi 0, %s178
      %s180 = sphi 0, %s178
      %s181 = sphi 0, %s180
      %s195 = sphi 0, %s181
      %s199 = sphi 0, %s199
      %s201 = sphi 0, %s199
      %s202 = sphi 0, %s201
      %s216 = sphi 0, %s202
      %s220 = sphi 0, %s220
      %s222 = sphi 0, %s220
      %s223 = sphi 0, %s222
      %s237 = sphi 0, %s223
      %s241 = sphi 0, %s241
      %s243 = sphi 0, %s241
      %s244 = sphi 0, %s243
      %s258 = sphi 0, %s244
      %s262 = sphi 0, %s262
      %s264 = sphi 0, %s262
      %s265 = sphi 0, %s264
      %s279 = sphi 0, %s265
    $region4: #{tpu_custom_call.1} parent=1 // loop_header_branch
      %21 = sbr.rel (%p19) target = $region8
    $region5: #{tpu_custom_call.1} parent=1 // loop_body
      %s23 = ssub.s32 %s18, 1
      %s24 = ssub.s32 %s18, 2
      %s25 = sadd.s32 %s18, 1
      %s26 = ssub.s32 %s18, %s25
      %p27 = scmp.eq.s32.totalorder %s26, 0
      %s29 = sadd.s32 %s28, 1
      %s30 = scalar_select %p27, %s28, %s29
      %p33 = pneg %p27
      %p34 = scmp.eq.s32.totalorder %s18, 1
      %p35 = por %p33, %p34
      %p36 = scmp.ne.s32.totalorder %s28, %s31
      %p37 = scmp.eq.s32.totalorder %s18, 0
      %p38 = por %p36, %p37
      %p39 = scmp.ne.s32.totalorder %s28, %s31
      %p40 = scmp.eq.s32.totalorder %s23, 1
      %p41 = por %p39, %p40
      %p42 = scmp.ne.s32.totalorder %s31, %s32
      %p43 = scmp.eq.s32.totalorder %s23, 0
      %p44 = por %p42, %p43
      %p45 = scmp.ne.s32.totalorder %s31, %s32
      %p46 = scmp.eq.s32.totalorder %s24, 1
      %p47 = por %p45, %p46
      %p49 = scmp.ne.s32.totalorder %s32, %s48
      %p50 = scmp.eq.s32.totalorder %s24, 0
      %p51 = por %p49, %p50
      %s53 = sadd.s32 %s52, 1
      %p56 = scmp.eq.s32.totalorder %s18, 1
      %p57 = scmp.ne.s32.totalorder %s52, %s54
      %p58 = scmp.eq.s32.totalorder %s18, 0
      %p59 = por %p57, %p58
      %p60 = scmp.ne.s32.totalorder %s52, %s54
      %p61 = scmp.eq.s32.totalorder %s23, 1
      %p62 = por %p60, %p61
      %p63 = scmp.ne.s32.totalorder %s54, %s55
      %p64 = scmp.eq.s32.totalorder %s23, 0
      %p65 = por %p63, %p64
      %p66 = scmp.ne.s32.totalorder %s54, %s55
      %p67 = scmp.eq.s32.totalorder %s24, 1
      %p68 = por %p66, %p67
      %p70 = scmp.ne.s32.totalorder %s55, %s69
      %p71 = scmp.eq.s32.totalorder %s24, 0
      %p72 = por %p70, %p71
      %s74 = sadd.s32 %s73, 1
      %p77 = scmp.eq.s32.totalorder %s18, 1
      %p78 = scmp.ne.s32.totalorder %s73, %s75
      %p79 = scmp.eq.s32.totalorder %s18, 0
      %p80 = por %p78, %p79
      %p81 = scmp.ne.s32.totalorder %s73, %s75
      %p82 = scmp.eq.s32.totalorder %s23, 1
      %p83 = por %p81, %p82
      %p84 = scmp.ne.s32.totalorder %s75, %s76
      %p85 = scmp.eq.s32.totalorder %s23, 0
      %p86 = por %p84, %p85
      %p87 = scmp.ne.s32.totalorder %s75, %s76
      %p88 = scmp.eq.s32.totalorder %s24, 1
      %p89 = por %p87, %p88
      %p91 = scmp.ne.s32.totalorder %s76, %s90
      %p92 = scmp.eq.s32.totalorder %s24, 0
      %p93 = por %p91, %p92
      %s95 = sadd.s32 %s94, 1
      %p98 = scmp.eq.s32.totalorder %s18, 1
      %p99 = scmp.ne.s32.totalorder %s94, %s96
      %p100 = scmp.eq.s32.totalorder %s18, 0
      %p101 = por %p99, %p100
      %p102 = scmp.ne.s32.totalorder %s94, %s96
      %p103 = scmp.eq.s32.totalorder %s23, 1
      %p104 = por %p102, %p103
      %p105 = scmp.ne.s32.totalorder %s96, %s97
      %p106 = scmp.eq.s32.totalorder %s23, 0
      %p107 = por %p105, %p106
      %p108 = scmp.ne.s32.totalorder %s96, %s97
      %p109 = scmp.eq.s32.totalorder %s24, 1
      %p110 = por %p108, %p109
      %p112 = scmp.ne.s32.totalorder %s97, %s111
      %p113 = scmp.eq.s32.totalorder %s24, 0
      %p114 = por %p112, %p113
      %s116 = sadd.s32 %s115, 1
      %p119 = scmp.eq.s32.totalorder %s18, 1
      %p120 = scmp.ne.s32.totalorder %s115, %s117
      %p121 = scmp.eq.s32.totalorder %s18, 0
      %p122 = por %p120, %p121
      %p123 = scmp.ne.s32.totalorder %s115, %s117
      %p124 = scmp.eq.s32.totalorder %s23, 1
      %p125 = por %p123, %p124
      %p126 = scmp.ne.s32.totalorder %s117, %s118
      %p127 = scmp.eq.s32.totalorder %s23, 0
      %p128 = por %p126, %p127
      %p129 = scmp.ne.s32.totalorder %s117, %s118
      %p130 = scmp.eq.s32.totalorder %s24, 1
      %p131 = por %p129, %p130
      %p133 = scmp.ne.s32.totalorder %s118, %s132
      %p134 = scmp.eq.s32.totalorder %s24, 0
      %p135 = por %p133, %p134
      %s137 = sadd.s32 %s136, 1
      %p140 = scmp.eq.s32.totalorder %s18, 1
      %p141 = scmp.ne.s32.totalorder %s136, %s138
      %p142 = scmp.eq.s32.totalorder %s18, 0
      %p143 = por %p141, %p142
      %p144 = scmp.ne.s32.totalorder %s136, %s138
      %p145 = scmp.eq.s32.totalorder %s23, 1
      %p146 = por %p144, %p145
      %p147 = scmp.ne.s32.totalorder %s138, %s139
      %p148 = scmp.eq.s32.totalorder %s23, 0
      %p149 = por %p147, %p148
      %p150 = scmp.ne.s32.totalorder %s138, %s139
      %p151 = scmp.eq.s32.totalorder %s24, 1
      %p152 = por %p150, %p151
      %p154 = scmp.ne.s32.totalorder %s139, %s153
      %p155 = scmp.eq.s32.totalorder %s24, 0
      %p156 = por %p154, %p155
      %s158 = sadd.s32 %s157, 1
      %p161 = scmp.eq.s32.totalorder %s18, 1
      %p162 = scmp.ne.s32.totalorder %s157, %s159
      %p163 = scmp.eq.s32.totalorder %s18, 0
      %p164 = por %p162, %p163
      %p165 = scmp.ne.s32.totalorder %s157, %s159
      %p166 = scmp.eq.s32.totalorder %s23, 1
      %p167 = por %p165, %p166
      %p168 = scmp.ne.s32.totalorder %s159, %s160
      %p169 = scmp.eq.s32.totalorder %s23, 0
      %p170 = por %p168, %p169
      %p171 = scmp.ne.s32.totalorder %s159, %s160
      %p172 = scmp.eq.s32.totalorder %s24, 1
      %p173 = por %p171, %p172
      %p175 = scmp.ne.s32.totalorder %s160, %s174
      %p176 = scmp.eq.s32.totalorder %s24, 0
      %p177 = por %p175, %p176
      %s179 = sadd.s32 %s178, 1
      %p182 = scmp.eq.s32.totalorder %s18, 1
      %p183 = scmp.ne.s32.totalorder %s178, %s180
      %p184 = scmp.eq.s32.totalorder %s18, 0
      %p185 = por %p183, %p184
      %p186 = scmp.ne.s32.totalorder %s178, %s180
      %p187 = scmp.eq.s32.totalorder %s23, 1
      %p188 = por %p186, %p187
      %p189 = scmp.ne.s32.totalorder %s180, %s181
      %p190 = scmp.eq.s32.totalorder %s23, 0
      %p191 = por %p189, %p190
      %p192 = scmp.ne.s32.totalorder %s180, %s181
      %p193 = scmp.eq.s32.totalorder %s24, 1
      %p194 = por %p192, %p193
      %p196 = scmp.ne.s32.totalorder %s181, %s195
      %p197 = scmp.eq.s32.totalorder %s24, 0
      %p198 = por %p196, %p197
      %s200 = sadd.s32 %s199, 1
      %p203 = scmp.eq.s32.totalorder %s18, 1
      %p204 = scmp.ne.s32.totalorder %s199, %s201
      %p205 = scmp.eq.s32.totalorder %s18, 0
      %p206 = por %p204, %p205
      %p207 = scmp.ne.s32.totalorder %s199, %s201
      %p208 = scmp.eq.s32.totalorder %s23, 1
      %p209 = por %p207, %p208
      %p210 = scmp.ne.s32.totalorder %s201, %s202
      %p211 = scmp.eq.s32.totalorder %s23, 0
      %p212 = por %p210, %p211
      %p213 = scmp.ne.s32.totalorder %s201, %s202
      %p214 = scmp.eq.s32.totalorder %s24, 1
      %p215 = por %p213, %p214
      %p217 = scmp.ne.s32.totalorder %s202, %s216
      %p218 = scmp.eq.s32.totalorder %s24, 0
      %p219 = por %p217, %p218
      %s221 = sadd.s32 %s220, 1
      %p224 = scmp.eq.s32.totalorder %s18, 1
      %p225 = scmp.ne.s32.totalorder %s220, %s222
      %p226 = scmp.eq.s32.totalorder %s18, 0
      %p227 = por %p225, %p226
      %p228 = scmp.ne.s32.totalorder %s220, %s222
      %p229 = scmp.eq.s32.totalorder %s23, 1
      %p230 = por %p228, %p229
      %p231 = scmp.ne.s32.totalorder %s222, %s223
      %p232 = scmp.eq.s32.totalorder %s23, 0
      %p233 = por %p231, %p232
      %p234 = scmp.ne.s32.totalorder %s222, %s223
      %p235 = scmp.eq.s32.totalorder %s24, 1
      %p236 = por %p234, %p235
      %p238 = scmp.ne.s32.totalorder %s223, %s237
      %p239 = scmp.eq.s32.totalorder %s24, 0
      %p240 = por %p238, %p239
      %s242 = sadd.s32 %s241, 1
      %p245 = scmp.eq.s32.totalorder %s18, 1
      %p246 = scmp.ne.s32.totalorder %s241, %s243
      %p247 = scmp.eq.s32.totalorder %s18, 0
      %p248 = por %p246, %p247
      %p249 = scmp.ne.s32.totalorder %s241, %s243
      %p250 = scmp.eq.s32.totalorder %s23, 1
      %p251 = por %p249, %p250
      %p252 = scmp.ne.s32.totalorder %s243, %s244
      %p253 = scmp.eq.s32.totalorder %s23, 0
      %p254 = por %p252, %p253
      %p255 = scmp.ne.s32.totalorder %s243, %s244
      %p256 = scmp.eq.s32.totalorder %s24, 1
      %p257 = por %p255, %p256
      %p259 = scmp.ne.s32.totalorder %s244, %s258
      %p260 = scmp.eq.s32.totalorder %s24, 0
      %p261 = por %p259, %p260
      %s263 = sadd.s32 %s262, 1
      %p266 = scmp.eq.s32.totalorder %s18, 1
      %p267 = scmp.ne.s32.totalorder %s262, %s264
      %p268 = scmp.eq.s32.totalorder %s18, 0
      %p269 = por %p267, %p268
      %p270 = scmp.ne.s32.totalorder %s262, %s264
      %p271 = scmp.eq.s32.totalorder %s23, 1
      %p272 = por %p270, %p271
      %p273 = scmp.ne.s32.totalorder %s264, %s265
      %p274 = scmp.eq.s32.totalorder %s23, 0
      %p275 = por %p273, %p274
      %p276 = scmp.ne.s32.totalorder %s264, %s265
      %p277 = scmp.eq.s32.totalorder %s24, 1
      %p278 = por %p276, %p277
      %p280 = scmp.ne.s32.totalorder %s265, %s279
      %p281 = scmp.eq.s32.totalorder %s24, 0
      %p282 = por %p280, %p281
      %p283 = scmp.le.s32.totalorder 1, %s18
      %p284 = scmp.lt.s32.totalorder %s18, 3
      %p285 = pnand %p283, %p284
      %p286 = pneg %p285
      // Predicated region
      $region9: #{tpu_custom_call.1} parent=5 // pred_check
        _
      $region10: #{tpu_custom_call.1} parent=5 // pred_check_branch
        %288 = sbr.rel (%p285) target = $region12
      $region11: #{tpu_custom_call.1} parent=5 // pred_region
        %s289 = ssub.s32 %s18, 1
        // Predicated region
        $region13: #{tpu_custom_call.1} parent=11 // pred_check
          %p290 = pneg %p65
        $region14: #{tpu_custom_call.1} parent=11 // pred_check_branch
          %292 = sbr.rel (%p290) target = $region16
        $region15: #{tpu_custom_call.1} parent=11 // pred_region
          _
        $region16: #{tpu_custom_call.1} parent=11 // pred_fallthru
          _
        // Predicated region
        $region17: #{tpu_custom_call.1} parent=11 // pred_check
          %p293 = pneg %p86
        $region18: #{tpu_custom_call.1} parent=11 // pred_check_branch
          %295 = sbr.rel (%p293) target = $region20
        $region19: #{tpu_custom_call.1} parent=11 // pred_region
          _
        $region20: #{tpu_custom_call.1} parent=11 // pred_fallthru
          _
        // Predicated region
        $region21: #{tpu_custom_call.1} parent=11 // pred_check
          %p296 = pneg %p107
        $region22: #{tpu_custom_call.1} parent=11 // pred_check_branch
          %298 = sbr.rel (%p296) target = $region24
        $region23: #{tpu_custom_call.1} parent=11 // pred_region
          _
        $region24: #{tpu_custom_call.1} parent=11 // pred_fallthru
          _
        // Predicated region
        $region25: #{tpu_custom_call.1} parent=11 // pred_check
          %p299 = pneg %p128
        $region26: #{tpu_custom_call.1} parent=11 // pred_check_branch
          %301 = sbr.rel (%p299) target = $region28
        $region27: #{tpu_custom_call.1} parent=11 // pred_region
          _
        $region28: #{tpu_custom_call.1} parent=11 // pred_fallthru
          _
        // Predicated region
        $region29: #{tpu_custom_call.1} parent=11 // pred_check
          %p302 = pneg %p149
        $region30: #{tpu_custom_call.1} parent=11 // pred_check_branch
          %304 = sbr.rel (%p302) target = $region32
        $region31: #{tpu_custom_call.1} parent=11 // pred_region
          _
        $region32: #{tpu_custom_call.1} parent=11 // pred_fallthru
          _
        // Predicated region
        $region33: #{tpu_custom_call.1} parent=11 // pred_check
          %p305 = pneg %p170
        $region34: #{tpu_custom_call.1} parent=11 // pred_check_branch
          %307 = sbr.rel (%p305) target = $region36
        $region35: #{tpu_custom_call.1} parent=11 // pred_region
          _
        $region36: #{tpu_custom_call.1} parent=11 // pred_fallthru
          _
        // Predicated region
        $region37: #{tpu_custom_call.1} parent=11 // pred_check
          %p308 = pneg %p191
        $region38: #{tpu_custom_call.1} parent=11 // pred_check_branch
          %310 = sbr.rel (%p308) target = $region40
        $region39: #{tpu_custom_call.1} parent=11 // pred_region
          _
        $region40: #{tpu_custom_call.1} parent=11 // pred_fallthru
          _
        // Predicated region
        $region41: #{tpu_custom_call.1} parent=11 // pred_check
          %p311 = pneg %p212
        $region42: #{tpu_custom_call.1} parent=11 // pred_check_branch
          %313 = sbr.rel (%p311) target = $region44
        $region43: #{tpu_custom_call.1} parent=11 // pred_region
          _
        $region44: #{tpu_custom_call.1} parent=11 // pred_fallthru
          _
        // Predicated region
        $region45: #{tpu_custom_call.1} parent=11 // pred_check
          %p314 = pneg %p233
        $region46: #{tpu_custom_call.1} parent=11 // pred_check_branch
          %316 = sbr.rel (%p314) target = $region48
        $region47: #{tpu_custom_call.1} parent=11 // pred_region
          _
        $region48: #{tpu_custom_call.1} parent=11 // pred_fallthru
          _
        // Predicated region
        $region49: #{tpu_custom_call.1} parent=11 // pred_check
          %p317 = pneg %p254
        $region50: #{tpu_custom_call.1} parent=11 // pred_check_branch
          %319 = sbr.rel (%p317) target = $region52
        $region51: #{tpu_custom_call.1} parent=11 // pred_region
          _
        $region52: #{tpu_custom_call.1} parent=11 // pred_fallthru
          _
      $region12: #{tpu_custom_call.1} parent=5 // pred_fallthru
        _
      %p320 = scmp.lt.s32.totalorder %s18, 2
      // Predicated region
      $region53: #{tpu_custom_call.1} parent=5 // pred_check
        %p321 = pneg %p320
      $region54: #{tpu_custom_call.1} parent=5 // pred_check_branch
        %323 = sbr.rel (%p321) target = $region56
      $region55: #{tpu_custom_call.1} parent=5 // pred_region
        // Predicated region
        $region57: #{tpu_custom_call.1} parent=55 // pred_check
          %p324 = pneg %p38
        $region58: #{tpu_custom_call.1} parent=55 // pred_check_branch
          %326 = sbr.rel (%p324) target = $region60
        $region59: #{tpu_custom_call.1} parent=55 // pred_region
          %s327 = sand.u32 %s28, 1
          %s328 = sand.u32 %s28, 1
          %s329 = smul.addr %s328, 4
          %s330 = scalar_lea.vmem [#allocation3], %s329
          %s331 = smul.addr %s18, 2
          %s332 = scalar_lea.vmem %s0, %s331
          // Predicated region
          $region61: #{tpu_custom_call.1} parent=59 // pred_check
            _
          $region62: #{tpu_custom_call.1} parent=59 // pred_check_branch
            %334 = sbr.rel (0) target = $region64
          $region63: #{tpu_custom_call.1} parent=59 // pred_region
            // Predicated region
            $region65: #{tpu_custom_call.1} parent=63 // pred_check
              _
            $region66: #{tpu_custom_call.1} parent=63 // pred_check_branch
              %336 = sbr.rel target = $region68
            $region67: #{tpu_custom_call.1} parent=63 // pred_region
              // Predicated region
              $region80: #{tpu_custom_call.1} parent=67 // pred_check
                _
              $region81: #{tpu_custom_call.1} parent=67 // pred_check_branch
                %354 = sbr.rel (0) target = $region83
              $region82: #{tpu_custom_call.1} parent=67 // pred_region
                %s356 = ssub.s32 4, 1
                loop: start=0, step=1, limit=1
                $region84: #{tpu_custom_call.1} parent=82 // loop_pre_header
                  _
                $region85: #{tpu_custom_call.1} parent=82 // loop_header
                  %s358 = sphi 0, %s362
                  %p359 = scmp.ge.s32.totalorder %s358, 1
                  %s363 = sphi %s332, %s332
                  %s364 = sphi %s330, %s330
                $region86: #{tpu_custom_call.1} parent=82 // loop_header_branch
                  %361 = sbr.rel (%p359) target = $region90
                $region87: #{tpu_custom_call.1} parent=82 // loop_body
                  %v365 = vld [vmem:[%s363] sm:%s356]
                  %366 = vst [vmem:[%s364] sm:%s356] %v365
                  %v367 = vld [vmem:[%s363 + $0x4] sm:%s356]
                  %368 = vst [vmem:[%s364 + $0x2] sm:%s356] %v367
                $region88: #{tpu_custom_call.1} parent=82 // loop_footer
                  %s362 = sadd.s32 1, %s358
                $region89: #{tpu_custom_call.1} parent=82 // loop_footer_branch
                  %357 = sbr.rel target = $region85
                $region90: #{tpu_custom_call.1} parent=82 // loop_exit
                  _
              $region83: #{tpu_custom_call.1} parent=67 // pred_fallthru
                _
            $region68: #{tpu_custom_call.1} parent=63 // pred_fallthru
              _
            // Predicated region
            $region69: #{tpu_custom_call.1} parent=63 // pred_check
              _
            $region70: #{tpu_custom_call.1} parent=63 // pred_check_branch
              %338 = sbr.rel (0) target = $region72
            $region71: #{tpu_custom_call.1} parent=63 // pred_region
              %s340 = ssub.s32 4, 1
              loop: start=0, step=1, limit=1
              $region73: #{tpu_custom_call.1} parent=71 // loop_pre_header
                _
              $region74: #{tpu_custom_call.1} parent=71 // loop_header
                %s342 = sphi 0, %s346
                %p343 = scmp.ge.s32.totalorder %s342, 1
                %s347 = sphi %s332, %s332
                %s348 = sphi %s330, %s330
              $region75: #{tpu_custom_call.1} parent=71 // loop_header_branch
                %345 = sbr.rel (%p343) target = $region79
              $region76: #{tpu_custom_call.1} parent=71 // loop_body
                %v349 = vld [vmem:[%s347] sm:%s340]
                %350 = vst [vmem:[%s348] sm:%s340] %v349
                %v351 = vld [vmem:[%s347 + $0x4] sm:%s340]
                %352 = vst [vmem:[%s348 + $0x2] sm:%s340] %v351
              $region77: #{tpu_custom_call.1} parent=71 // loop_footer
                %s346 = sadd.s32 1, %s342
              $region78: #{tpu_custom_call.1} parent=71 // loop_footer_branch
                %341 = sbr.rel target = $region74
              $region79: #{tpu_custom_call.1} parent=71 // loop_exit
                _
            $region72: #{tpu_custom_call.1} parent=63 // pred_fallthru
              _
          $region64: #{tpu_custom_call.1} parent=59 // pred_fallthru
            _
          %369 = vnop
        $region60: #{tpu_custom_call.1} parent=55 // pred_fallthru
          _
      $region56: #{tpu_custom_call.1} parent=5 // pred_fallthru
        _
      %p370 = scmp.le.s32.totalorder 1, %s18
      %p371 = scmp.lt.s32.totalorder %s18, 3
      %p372 = pnand %p370, %p371
      %p373 = pneg %p372
      // Predicated region
      $region91: #{tpu_custom_call.1} parent=5 // pred_check
        _
      $region92: #{tpu_custom_call.1} parent=5 // pred_check_branch
        %375 = sbr.rel (%p372) target = $region94
      $region93: #{tpu_custom_call.1} parent=5 // pred_region
        %s376 = ssub.s32 %s18, 1
        %s377 = sand.u32 %s31, 1
        %s378 = sand.u32 %s31, 1
        %s379 = smul.addr %s378, 4
        %s380 = scalar_lea.vmem [#allocation3], %s379
        // Predicated region
        $region95: #{tpu_custom_call.1} parent=93 // pred_check
          %p381 = pneg %p44
        $region96: #{tpu_custom_call.1} parent=93 // pred_check_branch
          %383 = sbr.rel (%p381) target = $region98
        $region97: #{tpu_custom_call.1} parent=93 // pred_region
          _
        $region98: #{tpu_custom_call.1} parent=93 // pred_fallthru
          _
        %s384 = sand.u32 %s31, 1
        %s385 = sand.u32 %s31, 1
        %s386 = smul.addr %s385, 4
        %s387 = scalar_lea.vmem [#allocation3], %s386
        %p388 = pneg %p44
        %p389 = pneg %p41
        %p390 = pneg %p65
        %p391 = pneg %p62
        %p392 = pneg %p86
        %p393 = pneg %p83
        %p394 = pneg %p107
        %p395 = pneg %p104
        %p396 = pneg %p128
        %p397 = pneg %p125
        %p398 = pneg %p149
        %p399 = pneg %p146
        %p400 = pneg %p170
        %p401 = pneg %p167
        %p402 = pneg %p191
        %p403 = pneg %p188
        %p404 = pneg %p212
        %p405 = pneg %p209
        %p406 = pneg %p233
        %p407 = pneg %p230
        %p408 = pneg %p254
        %p409 = pneg %p251
        %p410 = pneg %p275
        %p411 = pneg %p272
        %p413 = scmp.eq.s32.totalorder %s23, 0
        // Predicated region
        $region99: #{tpu_custom_call.1} parent=93 // pred_check
          %p414 = pneg %p413
        $region100: #{tpu_custom_call.1} parent=93 // pred_check_branch
          %416 = sbr.rel (%p414) target = $region102
        $region101: #{tpu_custom_call.1} parent=93 // pred_region
          %vm417 = vcmask 25600
          %418 = vst.msk [vmem:[#allocation2] sm:$0x3] %vm417, 0.0
        $region102: #{tpu_custom_call.1} parent=93 // pred_fallthru
          _
        %v419 = vld [vmem:[#allocation2] sm:$0x3]
        %v420 = vld [vmem:[%s380] sm:$0x3]
        %v421 = vld [vmem:[%s380 + $0x2] sm:$0x3]
        %v422 = vunpack.c.l.bf16 %v420
        %v423 = vunpack.c.l.bf16 %v421
        %vm424 = vcmask 1043456
        %v425 = vsel %vm424, %v422, 0.0
        %426 = vadd.xlane.f32.xlu0 %v425
        %v427 = vpop.xlane.xlu0 %426
        %v428 = vsel %vm424, %v423, 0.0
        %429 = vadd.xlane.f32.xlu0 %v428
        %v430 = vpop.xlane.xlu0 %429
        %v433 = vlaneseq
        %v434 = vand.u32 %v433, 127
        %v435 = vlaneseq
        %v436 = vshrl.u32 %v435, 7
        %v437 = vsub.s32 %v434, %v436
        %v438 = vrot.slane %v427, %v437
        %v439 = vlaneseq
        %v440 = vshrl.u32 %v439, 7
        %v441 = vsub.s32 %v434, %v440
        %v442 = vrot.slane %v430, %v441
        %vm443 = vcmask 1041409
        %v444 = vsel %vm443, %v442, %v438
        %v446 = vadd.f32 %v419, %v444
        %vm447 = vcmask 25600
        %448 = vst.msk [vmem:[#allocation2] sm:$0x3] %vm447, %v446
        %p449 = scmp.eq.s32.totalorder %s23, 1
        // Predicated region
        $region103: #{tpu_custom_call.1} parent=93 // pred_check
          %p450 = pneg %p449
        $region104: #{tpu_custom_call.1} parent=93 // pred_check_branch
          %452 = sbr.rel (%p450) target = $region106
        $region105: #{tpu_custom_call.1} parent=93 // pred_region
          %v453 = vld [vmem:[#allocation2] sm:$0x3]
          %v454 = vmul.f32 %v453, 0.00390625
          %v455 = vpack.c.bf16 %v454, %v454
          %v456 = vld [vmem:[%s1] sm:$0x3]
          %v457 = vld [vmem:[%s2] sm:$0x1]
          %v459 = vlaneseq
          %v460 = vshrl.u32 %v459, 7
          %v461 = vsub.s32 0, %v460
          %v462 = vrot.slane %v457, %v461
          %vm464 = vcmask 31744
          %v466 = vsel %vm464, %v455, 0
          %vm468 = vcmask 1041408
          %v470 = vsel %vm468, %v456, 0
          %472 = vmatprep.subr.bf16.mxu0 0
          %473 = vmatpush1.bf16.msra.mxu0 0
          %474 = vmatprep.subr.bf16.mxu0 0
          %475 = vmatpush1.bf16.msra.mxu0 0
          %476 = vmatprep.subr.bf16.mxu0 0
          %477 = vmatpush1.bf16.msra.mxu0 0
          %478 = vmatprep.subr.bf16.mxu0 0
          %479 = vmatpush1.bf16.msra.mxu0 0
          %480 = vmatprep.subr.bf16.mxu0 0
          %481 = vmatpush1.bf16.msra.mxu0 0
          %482 = vmatprep.subr.bf16.mxu0 0
          %483 = vmatpush1.bf16.msra.mxu0 0
          %484 = vmatprep.subr.bf16.mxu0 0
          %485 = vmatpush1.bf16.msra.mxu0 0
          %486 = vmatprep.subr.bf16.mxu0 0
          %487 = vmatpush1.bf16.msra.mxu0 %v470
          %488 = vmatprep.subr.bf16.mxu0 0
          %489 = vmatpush2.bf16.msra.mxu0 0
          %490 = vmatprep.subr.bf16.mxu0 0
          %491 = vmatpush2.bf16.msra.mxu0 0
          %492 = vmatprep.subr.bf16.mxu0 0
          %493 = vmatpush2.bf16.msra.mxu0 0
          %494 = vmatprep.subr.bf16.mxu0 0
          %495 = vmatpush2.bf16.msra.mxu0 0
          %496 = vmatprep.subr.bf16.mxu0 0
          %497 = vmatpush2.bf16.msra.mxu0 0
          %498 = vmatprep.subr.bf16.mxu0 0
          %499 = vmatpush2.bf16.msra.mxu0 0
          %500 = vmatprep.subr.bf16.mxu0 0
          %501 = vmatpush2.bf16.msra.mxu0 0
          %502 = vmatprep.subr.bf16.mxu0 0
          %503 = vmatpush2.bf16.msra.mxu0 0
          %504 = vmatprep.mubr.bf16.mxu0 0
          %505 = vmatmul.mubr.bf16.gmra.mxu0 %v466
          %v506 = vpop.f32.mrf.mxu0
          %v507 = vadd.f32 %v462, %v506
          %v508 = vpop.f32.mrf.mxu0
          %v509 = vpop.f32.mrf.mxu0
          %v510 = vpop.f32.mrf.mxu0
          %511 = vdwg.mxu0
          %v512 = vpack.c.bf16 %v507, %v507
          %v513 = vld [vmem:[%s3] sm:$0xf]
          %v514 = vld [vmem:[%s3 + $0x4] sm:$0xf]
          %v515 = vld [vmem:[%s3 + $0x8] sm:$0xf]
          %v516 = vld [vmem:[%s3 + $0xc] sm:$0xf]
          %v517 = vld [vmem:[%s3 + $0x10] sm:$0xf]
          %v518 = vld [vmem:[%s3 + $0x14] sm:$0xf]
          %v519 = vld [vmem:[%s3 + $0x18] sm:$0xf]
          %v520 = vld [vmem:[%s3 + $0x1c] sm:$0xf]
          %v521 = vld [vmem:[%s4] sm:$0x1]
          %v523 = vlaneseq
          %v524 = vshrl.u32 %v523, 7
          %v525 = vsub.s32 0, %v524
          %v526 = vrot.slane %v521, %v525
          %v536 = vunpack.c.l.b16 %v513
          %v537 = vunpack.c.l.b16 %v514
          %v538 = vunpack.c.l.b16 %v515
          %v539 = vunpack.c.l.b16 %v516
          %v540 = vunpack.c.l.b16 %v517
          %v541 = vunpack.c.l.b16 %v518
          %v542 = vunpack.c.l.b16 %v519
          %v543 = vunpack.c.l.b16 %v520
          %v544 = vpack.c.b16 %v537, %v536
          %v545 = vpack.c.b16 %v539, %v538
          %v546 = vpack.c.b16 %v541, %v540
          %v547 = vpack.c.b16 %v543, %v542
          %vm552 = vcmask 523264
          %v554 = vsel %vm552, %v512, 0
          %556 = vmatprep.subr.bf16.mxu0 0
          %557 = vmatpush1.bf16.msra.mxu0 0
          %558 = vmatprep.subr.bf16.mxu0 0
          %559 = vmatpush1.bf16.msra.mxu0 0
          %560 = vmatprep.subr.bf16.mxu0 0
          %561 = vmatpush1.bf16.msra.mxu0 0
          %562 = vmatprep.subr.bf16.mxu0 0
          %563 = vmatpush1.bf16.msra.mxu0 0
          %564 = vmatprep.subr.bf16.mxu0 0
          %565 = vmatpush1.bf16.msra.mxu0 %v547
          %566 = vmatprep.subr.bf16.mxu0 0
          %567 = vmatpush1.bf16.msra.mxu0 %v546
          %568 = vmatprep.subr.bf16.mxu0 0
          %569 = vmatpush1.bf16.msra.mxu0 %v545
          %570 = vmatprep.subr.bf16.mxu0 0
          %571 = vmatpush1.bf16.msra.mxu0 %v544
          %572 = vmatprep.subr.bf16.mxu0 0
          %573 = vmatpush2.bf16.msra.mxu0 0
          %574 = vmatprep.subr.bf16.mxu0 0
          %575 = vmatpush2.bf16.msra.mxu0 0
          %576 = vmatprep.subr.bf16.mxu0 0
          %577 = vmatpush2.bf16.msra.mxu0 0
          %578 = vmatprep.subr.bf16.mxu0 0
          %579 = vmatpush2.bf16.msra.mxu0 0
          %580 = vmatprep.subr.bf16.mxu0 0
          %581 = vmatpush2.bf16.msra.mxu0 0
          %582 = vmatprep.subr.bf16.mxu0 0
          %583 = vmatpush2.bf16.msra.mxu0 0
          %584 = vmatprep.subr.bf16.mxu0 0
          %585 = vmatpush2.bf16.msra.mxu0 0
          %586 = vmatprep.subr.bf16.mxu0 0
          %587 = vmatpush2.bf16.msra.mxu0 0
          %588 = vmatprep.mubr.bf16.mxu0 0
          %589 = vmatmul.mubr.bf16.gmra.mxu0 %v554
          %v590 = vpop.f32.mrf.mxu0
          %v591 = vadd.f32 %v526, %v590
          %v592 = vpop.f32.mrf.mxu0
          %v593 = vpop.f32.mrf.mxu0
          %v594 = vpop.f32.mrf.mxu0
          %595 = vdwg.mxu0
          %vm596 = vcmask 517120
          %v597 = vsel %vm596, %v591, 0.0
          %v598 = vrot.slane %v597, 4
          %v599 = vadd.f32 %v597, %v598
          %v600 = vrot.slane %v599, 2
          %v601 = vadd.f32 %v599, %v600
          %v602 = vrot.slane %v601, 1
          %v603 = vadd.f32 %v601, %v602
          %v604 = vrcp.pop 2.0
          %v605 = vmul.f32 %v603, %v604
          %v606 = vsub.f32 %v591, %v605
          %v607 = vmul.f32 %v606, %v606
          %v608 = vsel %vm596, %v607, 0.0
          %v609 = vrot.slane %v608, 4
          %v610 = vadd.f32 %v608, %v609
          %v611 = vrot.slane %v610, 2
          %v612 = vadd.f32 %v610, %v611
          %v613 = vrot.slane %v612, 1
          %v614 = vadd.f32 %v612, %v613
          %v615 = vmul.f32 %v614, %v604
          %v616 = vadd.f32 %v615, 1e-05
          %v617 = vrsqrt.pop %v616
          %v618 = vmul.f32 %v606, %v617
          %v619 = vld [vmem:[%s5] sm:$0x1]
          %v621 = vlaneseq
          %v622 = vshrl.u32 %v621, 7
          %v623 = vsub.s32 0, %v622
          %v624 = vrot.slane %v619, %v623
          %v626 = vmul.f32 %v618, %v624
          %v627 = vld [vmem:[%s6] sm:$0x1]
          %v629 = vlaneseq
          %v630 = vshrl.u32 %v629, 7
          %v631 = vsub.s32 0, %v630
          %v632 = vrot.slane %v627, %v631
          %v634 = vadd.f32 %v626, %v632
          %v635 = vpack.c.bf16 %v634, %v634
          %v636 = vld [vmem:[%s7] sm:$0xf]
          %v637 = vld [vmem:[%s7 + $0x4] sm:$0xf]
          %v638 = vld [vmem:[%s7 + $0x8] sm:$0xf]
          %v639 = vld [vmem:[%s7 + $0xc] sm:$0xf]
          %v640 = vld [vmem:[%s7 + $0x10] sm:$0xf]
          %v641 = vld [vmem:[%s7 + $0x14] sm:$0xf]
          %v642 = vld [vmem:[%s7 + $0x18] sm:$0xf]
          %v643 = vld [vmem:[%s7 + $0x1c] sm:$0xf]
          %v644 = vld [vmem:[%s8] sm:$0x1]
          %v646 = vlaneseq
          %v647 = vshrl.u32 %v646, 7
          %v648 = vsub.s32 0, %v647
          %v649 = vrot.slane %v644, %v648
          %v659 = vunpack.c.l.b16 %v636
          %v660 = vunpack.c.l.b16 %v637
          %v661 = vunpack.c.l.b16 %v638
          %v662 = vunpack.c.l.b16 %v639
          %v663 = vunpack.c.l.b16 %v640
          %v664 = vunpack.c.l.b16 %v641
          %v665 = vunpack.c.l.b16 %v642
          %v666 = vunpack.c.l.b16 %v643
          %v667 = vpack.c.b16 %v660, %v659
          %v668 = vpack.c.b16 %v662, %v661
          %v669 = vpack.c.b16 %v664, %v663
          %v670 = vpack.c.b16 %v666, %v665
          %v676 = vsel %vm552, %v635, 0
          %678 = vmatprep.subr.bf16.mxu0 0
          %679 = vmatpush1.bf16.msra.mxu0 0
          %680 = vmatprep.subr.bf16.mxu0 0
          %681 = vmatpush1.bf16.msra.mxu0 0
          %682 = vmatprep.subr.bf16.mxu0 0
          %683 = vmatpush1.bf16.msra.mxu0 0
          %684 = vmatprep.subr.bf16.mxu0 0
          %685 = vmatpush1.bf16.msra.mxu0 0
          %686 = vmatprep.subr.bf16.mxu0 0
          %687 = vmatpush1.bf16.msra.mxu0 %v670
          %688 = vmatprep.subr.bf16.mxu0 0
          %689 = vmatpush1.bf16.msra.mxu0 %v669
          %690 = vmatprep.subr.bf16.mxu0 0
          %691 = vmatpush1.bf16.msra.mxu0 %v668
          %692 = vmatprep.subr.bf16.mxu0 0
          %693 = vmatpush1.bf16.msra.mxu0 %v667
          %694 = vmatprep.subr.bf16.mxu0 0
          %695 = vmatpush2.bf16.msra.mxu0 0
          %696 = vmatprep.subr.bf16.mxu0 0
          %697 = vmatpush2.bf16.msra.mxu0 0
          %698 = vmatprep.subr.bf16.mxu0 0
          %699 = vmatpush2.bf16.msra.mxu0 0
          %700 = vmatprep.subr.bf16.mxu0 0
          %701 = vmatpush2.bf16.msra.mxu0 0
          %702 = vmatprep.subr.bf16.mxu0 0
          %703 = vmatpush2.bf16.msra.mxu0 0
          %704 = vmatprep.subr.bf16.mxu0 0
          %705 = vmatpush2.bf16.msra.mxu0 0
          %706 = vmatprep.subr.bf16.mxu0 0
          %707 = vmatpush2.bf16.msra.mxu0 0
          %708 = vmatprep.subr.bf16.mxu0 0
          %709 = vmatpush2.bf16.msra.mxu0 0
          %710 = vmatprep.mubr.bf16.mxu0 0
          %711 = vmatmul.mubr.bf16.gmra.mxu0 %v676
          %v712 = vpop.f32.mrf.mxu0
          %v713 = vadd.f32 %v649, %v712
          %v714 = vpop.f32.mrf.mxu0
          %v715 = vpop.f32.mrf.mxu0
          %v716 = vpop.f32.mrf.mxu0
          %717 = vdwg.mxu0
          %vm718 = vcmask 254976
          %v719 = vsel %vm718, %v713, 0.0
          %v720 = vrot.slane %v719, 4
          %v721 = vadd.f32 %v719, %v720
          %v722 = vrot.slane %v721, 2
          %v723 = vadd.f32 %v721, %v722
          %v724 = vrot.slane %v723, 1
          %v725 = vadd.f32 %v723, %v724
          %v726 = vmul.f32 %v725, %v604
          %v727 = vsub.f32 %v713, %v726
          %v728 = vmul.f32 %v727, %v727
          %v729 = vsel %vm718, %v728, 0.0
          %v730 = vrot.slane %v729, 4
          %v731 = vadd.f32 %v729, %v730
          %v732 = vrot.slane %v731, 2
          %v733 = vadd.f32 %v731, %v732
          %v734 = vrot.slane %v733, 1
          %v735 = vadd.f32 %v733, %v734
          %v736 = vmul.f32 %v735, %v604
          %v737 = vadd.f32 %v736, 1e-05
          %v738 = vrsqrt.pop %v737
          %v739 = vmul.f32 %v727, %v738
          %v740 = vld [vmem:[%s9] sm:$0x1]
          %v742 = vlaneseq
          %v743 = vshrl.u32 %v742, 7
          %v744 = vsub.s32 0, %v743
          %v745 = vrot.slane %v740, %v744
          %v747 = vmul.f32 %v739, %v745
          %v748 = vld [vmem:[%s10] sm:$0x1]
          %v750 = vlaneseq
          %v751 = vshrl.u32 %v750, 7
          %v752 = vsub.s32 0, %v751
          %v753 = vrot.slane %v748, %v752
          %v755 = vadd.f32 %v747, %v753
          %756 = vst.msk [vmem:[#allocation4] sm:$0x3] %vm718, %v755
        $region106: #{tpu_custom_call.1} parent=93 // pred_fallthru
          _
        // Predicated region
        $region107: #{tpu_custom_call.1} parent=93 // pred_check
          %p757 = pneg %p272
        $region108: #{tpu_custom_call.1} parent=93 // pred_check_branch
          %759 = sbr.rel (%p757) target = $region110
        $region109: #{tpu_custom_call.1} parent=93 // pred_region
          %s761 = ssub.s32 32, 32
          %762 = vsyncadd [#allocation5], %s761
          %s764 = sshll.u32 [#allocation4], 4
          %s765 = int_to_ptr.vmem [resolvable:$true] %s764
          %767 = dma.vmem_to_hbm [thread:$0]  %s765, 32, %s11, [#allocation5]
        $region110: #{tpu_custom_call.1} parent=93 // pred_fallthru
          _
        // Predicated region
        $region111: #{tpu_custom_call.1} parent=93 // pred_check
          %p768 = pneg %p272
        $region112: #{tpu_custom_call.1} parent=93 // pred_check_branch
          %770 = sbr.rel (%p768) target = $region114
        $region113: #{tpu_custom_call.1} parent=93 // pred_region
          %771 = dma.done [#allocation5], 32
        $region114: #{tpu_custom_call.1} parent=93 // pred_fallthru
          _
      $region94: #{tpu_custom_call.1} parent=5 // pred_fallthru
        _
      %p772 = scmp.le.s32.totalorder 2, %s18
      // Predicated region
      $region115: #{tpu_custom_call.1} parent=5 // pred_check
        %p773 = pneg %p772
      $region116: #{tpu_custom_call.1} parent=5 // pred_check_branch
        %775 = sbr.rel (%p773) target = $region118
      $region117: #{tpu_custom_call.1} parent=5 // pred_region
        %s776 = ssub.s32 %s18, 2
      $region118: #{tpu_custom_call.1} parent=5 // pred_fallthru
        _
    $region6: #{tpu_custom_call.1} parent=1 // loop_footer
      %s22 = sadd.s32 1, %s18
    $region7: #{tpu_custom_call.1} parent=1 // loop_footer_branch
      %17 = sbr.rel target = $region3
    $region8: #{tpu_custom_call.1} parent=1 // loop_exit
      _
    %777 = vsyncpa [#allocation5], 1
    %s778 = scalar_lea.sflag [#allocation5], 1
    %779 = vsyncpa %s778, 1

</llo_original>
